<compile_context>
chip_gen: v5e
topology: v5e:2x2
jax: 0.10.0
libtpu: 0.0.40
codegen_flags: <defaults>
</compile_context>

<pallas_src>
import math

import jax
import jax.numpy as jnp
from jax.experimental import pallas as pl
from jax.experimental.pallas import tpu as pltpu


def _masker_kernel(x_ref, mask_ref, emb_ref, out_ref):
    """Blend one tile of patches with the mask embedding.

    x_ref    : (TB, D, TP) input patches
    mask_ref : (TB, 1, TP) masking mask as int32 {0, 1}
    emb_ref  : (1,  D, 1)  mask embedding (resident across all grid steps)
    out_ref  : (TB, D, TP)
    """
    x = x_ref[...]
    m = mask_ref[...] != 0          # broadcast over D (sublanes)
    emb = emb_ref[...]              # broadcast over batch and P (lanes)
    out_ref[...] = jnp.where(m, emb, x)


def _tile_budget():
    """Per-generation x-tile byte target and scoped-VMEM limit.

    Footprint ~= 2 buffers x (x tile + out tile + tiny mask tile) ~= 4x the x tile,
    so an 8 MiB tile target needs ~32-36 MiB scoped VMEM; 48 MiB fits under v7x's
    64 MiB physical VMEM and well under v5e/v6e's 128 MiB.
    """
    try:
        info = pltpu.get_tpu_info()
        physical = getattr(info, "vmem_capacity_bytes", None) or 64 * 1024 * 1024
    except Exception:
        physical = 64 * 1024 * 1024  # assume the smallest (v7x-like) if query fails
    target = min(8 * 1024 * 1024, physical // 8)
    target = max(2 * 1024 * 1024, target)
    vmem_limit = min(physical * 3 // 4, 6 * target)
    return target, vmem_limit


def _pick_lane_tile(P, D, itemsize, target_bytes):
    """Largest multiple-of-128 lane tile with x-tile <= target_bytes, capped at P.

    Only the BLOCK's last dim must be a multiple of 128 (or span the full array),
    so tp may be a 128-multiple even when P is not; Pallas masks the final
    partial block.
    """
    bytes_per_lane = max(1, D * itemsize)
    target_lanes = max(128, target_bytes // bytes_per_lane)
    tp = max(128, (target_lanes // 128) * 128)
    if tp >= P:
        return P  # full extent (also covers P < 128 / P not a multiple of 128)
    return tp


def masker_forward(x_bdhw, masking_mask_bhw, mask_embedding):
    """Apply the _Masker forward pass.

    Args:
        x_bdhw:            (B, D, H, W) float patches  (PyTorch NCHW convention)
        masking_mask_bhw:  (B, H, W)    bool mask, True = replace with mask token
        mask_embedding:    (D,)         mask embedding

    Returns:
        (output (B, D, H, W), masking_mask (B, H, W) bool)
    """
    B, D, H, W = x_bdhw.shape
    P = H * W

    # NCHW -> (B, D, P): pure reshape, no data movement.
    x_bdp = x_bdhw.reshape(B, D, P)
    mask_b1p = masking_mask_bhw.reshape(B, 1, P).astype(jnp.int32)
    emb_1d1 = mask_embedding.astype(x_bdp.dtype).reshape(1, D, 1)

    itemsize = jnp.dtype(x_bdp.dtype).itemsize
    target_bytes, vmem_limit = _tile_budget()
    sample_bytes = D * P * itemsize

    if sample_bytes <= target_bytes:
        # Small-P path: block several batch samples per grid step so the
        # ~0.35 us per-step overhead is amortized, but keep a handful of grid
        # steps so the DMA pipeline and v7x's two TensorCores stay busy.
        tb = max(1, min(B, target_bytes // max(1, sample_bytes)))
        min_steps = min(B, 8)
        tb = max(1, min(tb, pl.cdiv(B, min_steps)))
        grid = (pl.cdiv(B, tb),)
        in_specs = [
            pl.BlockSpec((tb, D, P), lambda b: (b, 0, 0)),
            pl.BlockSpec((tb, 1, P), lambda b: (b, 0, 0)),
            # Constant block index -> embedding fetched once, resident in VMEM.
            pl.BlockSpec((1, D, 1), lambda b: (0, 0, 0)),
        ]
        out_spec = pl.BlockSpec((tb, D, P), lambda b: (b, 0, 0))
        dims = ("parallel",)
    else:
        tp = _pick_lane_tile(P, D, itemsize, target_bytes)
        # If B == 1, make sure there are at least 2 lane tiles so both v7x
        # TensorCores get work.
        if B == 1 and pl.cdiv(P, tp) < 2 and P >= 256:
            tp = max(128, (pl.cdiv(P, 2) // 128) * 128)
        grid = (B, pl.cdiv(P, tp))
        in_specs = [
            pl.BlockSpec((1, D, tp), lambda b, p: (b, 0, p)),
            pl.BlockSpec((1, 1, tp), lambda b, p: (b, 0, p)),
            pl.BlockSpec((1, D, 1), lambda b, p: (0, 0, 0)),
        ]
        out_spec = pl.BlockSpec((1, D, tp), lambda b, p: (b, 0, p))
        dims = ("parallel", "parallel")

    out_bdp = pl.pallas_call(
        _masker_kernel,
        out_shape=jax.ShapeDtypeStruct((B, D, P), x_bdp.dtype),
        grid=grid,
        in_specs=in_specs,
        out_specs=out_spec,
        compiler_params=pltpu.CompilerParams(
            dimension_semantics=dims,
            vmem_limit_bytes=int(vmem_limit),
        ),
    )(x_bdp, mask_b1p, emb_1d1)

    # (B, D, P) -> NCHW: free reshape.
    return out_bdp.reshape(B, D, H, W), masking_mask_bhw


def init_mask_embedding(key, embedding_dim, dtype=jnp.float32):
    """xavier_normal_ on a (1, 1, D) view: fan_in = fan_out = D -> std = 1/sqrt(D)."""
    std = math.sqrt(2.0 / (embedding_dim + embedding_dim))
    return std * jax.random.normal(key, (embedding_dim,), dtype=dtype)


def create_masking_mask(key, batch_size, height, width, num_masks):
    """Concrete (deterministic given `key`) mask policy: choose `num_masks` patches
    per sample uniformly at random.
    # TODO(synk): the reference `create_masking_mask` is @abstractmethod; cluster-based
    # policies (min_cluster/max_cluster, padding_mask handling) are subclass-specific.
    """
    P = height * width
    keys = jax.random.split(key, batch_size)

    def one_sample(k):
        perm = jax.random.permutation(k, P)
        mask_flat = jnp.zeros((P,), dtype=jnp.bool_).at[perm[:num_masks]].set(True)
        return mask_flat.reshape(height, width)

    return jax.vmap(one_sample)(keys)


if __name__ == "__main__":
    # Small shapes consistent with the module: patches (B, D, H, W)
    B, D, H, W = 2, 32, 8, 8
    mask_ratio = 0.25
    num_masks = int(H * W * mask_ratio)

    root = jax.random.PRNGKey(0)
    k_x, k_emb, k_mask = jax.random.split(root, 3)

    x = jax.random.normal(k_x, (B, D, H, W), dtype=jnp.float32)
    mask_embedding = init_mask_embedding(k_emb, D)
    masking_mask = create_masking_mask(k_mask, B, H, W, num_masks)

    output, out_mask = masker_forward(x, masking_mask, mask_embedding)
    output = jax.block_until_ready(output)
    out_mask = jax.block_until_ready(out_mask)

    # Reference check in plain JAX (mirrors the PyTorch forward exactly).
    attn = (1 - masking_mask.astype(jnp.int32))[:, None, :, :].astype(x.dtype)
    null = masking_mask.astype(jnp.int32)[:, None, :, :].astype(x.dtype)
    ref = attn * x + null * mask_embedding.reshape(1, D, 1, 1)
    assert output.shape == (B, D, H, W)
    assert out_mask.shape == (B, H, W) and out_mask.dtype == jnp.bool_
    assert jnp.allclose(output, ref, atol=1e-6), "mismatch vs reference"

    print("KERNEL_OK")
</pallas_src>

<mosaic_0001>
module attributes {stable_mosaic.version = 11 : i64} {
  func.func @_masker_kernel(%arg0: i32, %arg1: memref<1x32x64xf32, #tpu.memory_space<vmem>>, %arg2: memref<1x1x64xi32, #tpu.memory_space<vmem>>, %arg3: memref<1x32x1xf32, #tpu.memory_space<vmem>>, %arg4: memref<1x32x64xf32, #tpu.memory_space<vmem>>) attributes {dimension_semantics = [#tpu.dimension_semantics<parallel>], iteration_bounds = array<i64: 2>, scalar_prefetch = 0 : i64, scratch_operands = 0 : i64, tpu.core_type = #tpu.core_type<tc>, window_params = [{transform_indices = @transform_0, window_bounds = array<i64: 1, 32, 64>}, {transform_indices = @transform_1, window_bounds = array<i64: 1, 1, 64>}, {pipeline_mode = #tpu.pipeline_mode<synchronous>, transform_indices = @transform_2, window_bounds = array<i64: 1, 32, 1>}, {transform_indices = @transform_3, window_bounds = array<i64: 1, 32, 64>}]} {
    %c0 = arith.constant 0 : index
    %c0_0 = arith.constant 0 : index
    %c0_1 = arith.constant 0 : index
    %0 = vector.load %arg1[%c0, %c0_0, %c0_1] : memref<1x32x64xf32, #tpu.memory_space<vmem>>, vector<1x32x64xf32>
    %c0_2 = arith.constant 0 : index
    %c0_3 = arith.constant 0 : index
    %c0_4 = arith.constant 0 : index
    %1 = vector.load %arg2[%c0_2, %c0_3, %c0_4] : memref<1x1x64xi32, #tpu.memory_space<vmem>>, vector<1x1x64xi32>
    %c0_i32 = arith.constant 0 : i32
    %2 = vector.broadcast %c0_i32 : i32 to vector<1x1x64xi32>
    %3 = arith.cmpi ne, %1, %2 : vector<1x1x64xi32>
    %c0_5 = arith.constant 0 : index
    %c0_6 = arith.constant 0 : index
    %c0_7 = arith.constant 0 : index
    %4 = vector.load %arg3[%c0_5, %c0_6, %c0_7] : memref<1x32x1xf32, #tpu.memory_space<vmem>>, vector<1x32x1xf32>
    %5 = vector.shape_cast %3 : vector<1x1x64xi1> to vector<1x1x64xi1>
    %6 = vector.broadcast %5 : vector<1x1x64xi1> to vector<1x32x64xi1>
    %7 = vector.shape_cast %4 : vector<1x32x1xf32> to vector<1x32x1xf32>
    %8 = vector.broadcast %7 : vector<1x32x1xf32> to vector<1x32x64xf32>
    %9 = arith.select %6, %8, %0 : vector<1x32x64xi1>, vector<1x32x64xf32>
    %c0_8 = arith.constant 0 : index
    %c0_9 = arith.constant 0 : index
    %c0_10 = arith.constant 0 : index
    %10 = vector.load %arg4[%c0_8, %c0_9, %c0_10] : memref<1x32x64xf32, #tpu.memory_space<vmem>>, vector<1x32x64xf32>
    tpu.vector_store %arg4[%c0_8, %c0_9, %c0_10], %9 {strides = array<i32>} : memref<1x32x64xf32, #tpu.memory_space<vmem>>, vector<1x32x64xf32>,
    return
  }
  func.func @transform_0(%arg0: i32) -> (i32, i32, i32) {
    %c0_i32 = arith.constant 0 : i32
    %c0_i32_0 = arith.constant 0 : i32
    %c0_i32_1 = arith.constant 0 : i32
    return %arg0, %c0_i32, %c0_i32_0 : i32, i32, i32
  }
  func.func @transform_1(%arg0: i32) -> (i32, i32, i32) {
    %c0_i32 = arith.constant 0 : i32
    %c0_i32_0 = arith.constant 0 : i32
    %c0_i32_1 = arith.constant 0 : i32
    return %arg0, %c0_i32, %c0_i32_0 : i32, i32, i32
  }
  func.func @transform_2(%arg0: i32) -> (i32, i32, i32) {
    %c0_i32 = arith.constant 0 : i32
    %c0_i32_0 = arith.constant 0 : i32
    %c0_i32_1 = arith.constant 0 : i32
    %c0_i32_2 = arith.constant 0 : i32
    return %c0_i32, %c0_i32_0, %c0_i32_1 : i32, i32, i32
  }
  func.func @transform_3(%arg0: i32) -> (i32, i32, i32) {
    %c0_i32 = arith.constant 0 : i32
    %c0_i32_0 = arith.constant 0 : i32
    %c0_i32_1 = arith.constant 0 : i32
    return %arg0, %c0_i32, %c0_i32_0 : i32, i32, i32
  }
}

</mosaic_0001>

<llo_original>
// kernel: tpu_custom_call.1
$region0: #{tpu_custom_call.1}
  #allocation0 [shape = 'u32[]', space=smem, size = 0x4, offset = 0x4, fixed_abs, tag = 'smem constant byte address 0x4 - core index']
  #allocation1 [shape = 'u32[72,128]{1,0:T(1,128)}', space=vmem, size = 0x9000, scoped, tag = 'internal scratch']
  %s0 = inlined_call_operand.hbm [shape: f32[2,32,64], index: 0, kind: input, shape index: {}]
  %s1 = inlined_call_operand.vmem [shape: s32[2,1,64], index: 1, kind: input, shape index: {}]
  %s2 = inlined_call_operand.vmem [shape: f32[1,32,1], index: 2, kind: input, shape index: {}]
  %s3 = inlined_call_operand.hbm [shape: f32[2,32,64], index: 3, kind: output, shape index: {}]
  %s4 = sld [smem:[#allocation0]]
  $region49: #{tpu_custom_call.1} parent=0
    _
  %s6 = ssub.s32 1, %s4
  %s7 = scalar_select 0, %s6, %s4
  $region1: #{tpu_custom_call.1} parent=0
    #allocation2 [shape = 'u8[32768]{0}', space=vmem, size = 0x8000, scoped, tag = 'input window, operand 0']
    #allocation3 [shape = 's32[2]{0}', space=sflag, size = 0x8, scoped, tag = 'scoped memory for tpu_custom_call.1']
    #allocation4 [shape = 's32[2]{0}', space=sflag, size = 0x8, scoped, tag = 'scoped memory for tpu_custom_call.1']
    #allocation5 [shape = 'u8[32768]{0}', space=vmem, size = 0x8000, scoped, tag = 'output window, operand 0']
    %8 = vsyncpa [#allocation3], 0
    %s9 = scalar_lea.sflag [#allocation3], 1
    %10 = vsyncpa %s9, 0
    %11 = vsyncpa [#allocation4], 0
    %s12 = scalar_lea.sflag [#allocation4], 1
    %13 = vsyncpa %s12, 0
    loop: start=0, step=1, limit=4
    $region2: #{tpu_custom_call.1} parent=1 // loop_pre_header
      _
    $region3: #{tpu_custom_call.1} parent=1 // loop_header
      %s15 = sphi 0, %s19
      %p16 = scmp.ge.s32.totalorder %s15, 4
      %s25 = sphi 0, %s27
      %s28 = sphi 0, %s25
      %s29 = sphi 0, %s28
      %s45 = sphi 0, %s29
      %s51 = sphi 0, %s53
      %s54 = sphi 0, %s51
      %s55 = sphi 0, %s54
      %s71 = sphi 0, %s55
      %s75 = sphi 0, %s75
      %s77 = sphi 0, %s75
      %s78 = sphi 0, %s77
      %s92 = sphi 0, %s78
      %s98 = sphi 0, %s100
      %s101 = sphi 0, %s98
      %s102 = sphi 0, %s101
      %s118 = sphi 0, %s102
    $region4: #{tpu_custom_call.1} parent=1 // loop_header_branch
      %18 = sbr.rel (%p16) target = $region8
    $region5: #{tpu_custom_call.1} parent=1 // loop_body
      %s20 = ssub.s32 %s15, 1
      %s21 = ssub.s32 %s15, 2
      %s22 = sadd.s32 %s15, 1
      %s23 = ssub.s32 %s15, %s22
      %p24 = scmp.eq.s32.totalorder %s23, 0
      %s26 = sadd.s32 %s25, 1
      %s27 = scalar_select %p24, %s25, %s26
      %p30 = pneg %p24
      %p31 = scmp.eq.s32.totalorder %s15, 1
      %p32 = por %p30, %p31
      %p33 = scmp.ne.s32.totalorder %s25, %s28
      %p34 = scmp.eq.s32.totalorder %s15, 0
      %p35 = por %p33, %p34
      %p36 = scmp.ne.s32.totalorder %s25, %s28
      %p37 = scmp.eq.s32.totalorder %s20, 1
      %p38 = por %p36, %p37
      %p39 = scmp.ne.s32.totalorder %s28, %s29
      %p40 = scmp.eq.s32.totalorder %s20, 0
      %p41 = por %p39, %p40
      %p42 = scmp.ne.s32.totalorder %s28, %s29
      %p43 = scmp.eq.s32.totalorder %s21, 1
      %p44 = por %p42, %p43
      %p46 = scmp.ne.s32.totalorder %s29, %s45
      %p47 = scmp.eq.s32.totalorder %s21, 0
      %p48 = por %p46, %p47
      %s49 = ssub.s32 %s15, %s22
      %p50 = scmp.eq.s32.totalorder %s49, 0
      %s52 = sadd.s32 %s51, 1
      %s53 = scalar_select %p50, %s51, %s52
      %p56 = pneg %p50
      %p57 = scmp.eq.s32.totalorder %s15, 1
      %p58 = por %p56, %p57
      %p59 = scmp.ne.s32.totalorder %s51, %s54
      %p60 = scmp.eq.s32.totalorder %s15, 0
      %p61 = por %p59, %p60
      %p62 = scmp.ne.s32.totalorder %s51, %s54
      %p63 = scmp.eq.s32.totalorder %s20, 1
      %p64 = por %p62, %p63
      %p65 = scmp.ne.s32.totalorder %s54, %s55
      %p66 = scmp.eq.s32.totalorder %s20, 0
      %p67 = por %p65, %p66
      %p68 = scmp.ne.s32.totalorder %s54, %s55
      %p69 = scmp.eq.s32.totalorder %s21, 1
      %p70 = por %p68, %p69
      %p72 = scmp.ne.s32.totalorder %s55, %s71
      %p73 = scmp.eq.s32.totalorder %s21, 0
      %p74 = por %p72, %p73
      %s76 = sadd.s32 %s75, 1
      %p79 = scmp.eq.s32.totalorder %s15, 1
      %p80 = scmp.ne.s32.totalorder %s75, %s77
      %p81 = scmp.eq.s32.totalorder %s15, 0
      %p82 = por %p80, %p81
      %p83 = scmp.ne.s32.totalorder %s75, %s77
      %p84 = scmp.eq.s32.totalorder %s20, 1
      %p85 = por %p83, %p84
      %p86 = scmp.ne.s32.totalorder %s77, %s78
      %p87 = scmp.eq.s32.totalorder %s20, 0
      %p88 = por %p86, %p87
      %p89 = scmp.ne.s32.totalorder %s77, %s78
      %p90 = scmp.eq.s32.totalorder %s21, 1
      %p91 = por %p89, %p90
      %p93 = scmp.ne.s32.totalorder %s78, %s92
      %p94 = scmp.eq.s32.totalorder %s21, 0
      %p95 = por %p93, %p94
      %s96 = ssub.s32 %s15, %s22
      %p97 = scmp.eq.s32.totalorder %s96, 0
      %s99 = sadd.s32 %s98, 1
      %s100 = scalar_select %p97, %s98, %s99
      %p103 = pneg %p97
      %p104 = scmp.eq.s32.totalorder %s15, 1
      %p105 = por %p103, %p104
      %p106 = scmp.ne.s32.totalorder %s98, %s101
      %p107 = scmp.eq.s32.totalorder %s15, 0
      %p108 = por %p106, %p107
      %p109 = scmp.ne.s32.totalorder %s98, %s101
      %p110 = scmp.eq.s32.totalorder %s20, 1
      %p111 = por %p109, %p110
      %p112 = scmp.ne.s32.totalorder %s101, %s102
      %p113 = scmp.eq.s32.totalorder %s20, 0
      %p114 = por %p112, %p113
      %p115 = scmp.ne.s32.totalorder %s101, %s102
      %p116 = scmp.eq.s32.totalorder %s21, 1
      %p117 = por %p115, %p116
      %p119 = scmp.ne.s32.totalorder %s102, %s118
      %p120 = scmp.eq.s32.totalorder %s21, 0
      %p121 = por %p119, %p120
      %p122 = scmp.le.s32.totalorder 1, %s15
      %p123 = scmp.lt.s32.totalorder %s15, 3
      %p124 = pnand %p122, %p123
      %p125 = pneg %p124
      // Predicated region
      $region9: #{tpu_custom_call.1} parent=5 // pred_check
        _
      $region10: #{tpu_custom_call.1} parent=5 // pred_check_branch
        %127 = sbr.rel (%p124) target = $region12
      $region11: #{tpu_custom_call.1} parent=5 // pred_region
        %s128 = ssub.s32 %s15, 1
        // Predicated region
        $region13: #{tpu_custom_call.1} parent=11 // pred_check
          %p129 = pneg %p88
        $region14: #{tpu_custom_call.1} parent=11 // pred_check_branch
          %131 = sbr.rel (%p129) target = $region16
        $region15: #{tpu_custom_call.1} parent=11 // pred_region
          _
        $region16: #{tpu_custom_call.1} parent=11 // pred_fallthru
          _
      $region12: #{tpu_custom_call.1} parent=5 // pred_fallthru
        _
      %p132 = scmp.lt.s32.totalorder %s15, 2
      // Predicated region
      $region17: #{tpu_custom_call.1} parent=5 // pred_check
        %p133 = pneg %p132
      $region18: #{tpu_custom_call.1} parent=5 // pred_check_branch
        %135 = sbr.rel (%p133) target = $region20
      $region19: #{tpu_custom_call.1} parent=5 // pred_region
        // Predicated region
        $region21: #{tpu_custom_call.1} parent=19 // pred_check
          %p136 = pneg %p35
        $region22: #{tpu_custom_call.1} parent=19 // pred_check_branch
          %138 = sbr.rel (%p136) target = $region24
        $region23: #{tpu_custom_call.1} parent=19 // pred_region
          %s139 = sand.u32 %s25, 1
          %s140 = scalar_lea.sflag [#allocation3], %s139
          %s141 = sand.u32 %s25, 1
          %s142 = smul.addr %s141, 32
          %s143 = scalar_lea.vmem [#allocation2], %s142
          %145 = vsyncadd %s140, 0
          %s146 = smul.addr %s15, 4
          %s147 = smul.addr %s146, 8
          %s148 = scalar_lea.hbm %s0, %s147
          %s149 = sshll.u32 %s148, 4
          %s150 = int_to_ptr.hbm [resolvable:$true] %s149
          %s151 = sshll.u32 %s143, 4
          %s152 = int_to_ptr.vmem [resolvable:$true] %s151
          %157 = dma.hbm_to_vmem [thread:$0]  %s150, 512, %s152, %s140, 128, 128, 8
        $region24: #{tpu_custom_call.1} parent=19 // pred_fallthru
          _
        // Predicated region
        $region25: #{tpu_custom_call.1} parent=19 // pred_check
          %p158 = pneg %p61
        $region26: #{tpu_custom_call.1} parent=19 // pred_check_branch
          %160 = sbr.rel (%p158) target = $region28
        $region27: #{tpu_custom_call.1} parent=19 // pred_region
          %p161 = scmp.lt.s32.totalorder %s15, 1
          %s162 = scalar_select %p161, %s15, 1
          %s163 = scalar_lea.vmem %s1, %s162
        $region28: #{tpu_custom_call.1} parent=19 // pred_fallthru
          _
      $region20: #{tpu_custom_call.1} parent=5 // pred_fallthru
        _
      %p164 = scmp.le.s32.totalorder 1, %s15
      %p165 = scmp.lt.s32.totalorder %s15, 3
      %p166 = pnand %p164, %p165
      %p167 = pneg %p166
      // Predicated region
      $region29: #{tpu_custom_call.1} parent=5 // pred_check
        _
      $region30: #{tpu_custom_call.1} parent=5 // pred_check_branch
        %169 = sbr.rel (%p166) target = $region32
      $region31: #{tpu_custom_call.1} parent=5 // pred_region
        %s170 = ssub.s32 %s15, 1
        %s171 = sand.u32 %s28, 1
        %s172 = scalar_lea.sflag [#allocation3], %s171
        %s173 = sand.u32 %s28, 1
        %s174 = smul.addr %s173, 32
        %s175 = scalar_lea.vmem [#allocation2], %s174
        // Predicated region
        $region33: #{tpu_custom_call.1} parent=31 // pred_check
          %p176 = pneg %p41
        $region34: #{tpu_custom_call.1} parent=31 // pred_check_branch
          %178 = sbr.rel (%p176) target = $region36
        $region35: #{tpu_custom_call.1} parent=31 // pred_region
          %180 = dma.done %s172, 512
        $region36: #{tpu_custom_call.1} parent=31 // pred_fallthru
          _
        %s181 = sand.u32 %s28, 1
        %s182 = scalar_lea.sflag [#allocation3], %s181
        %s183 = sand.u32 %s28, 1
        %s184 = smul.addr %s183, 32
        %s185 = scalar_lea.vmem [#allocation2], %s184
        %p186 = pneg %p41
        %p187 = pneg %p38
        %p188 = scmp.lt.s32.totalorder %s20, 1
        %s189 = scalar_select %p188, %s20, 1
        %s190 = scalar_lea.vmem %s1, %s189
        %p191 = pneg %p67
        %p192 = pneg %p64
        %p193 = pneg %p88
        %p194 = pneg %p85
        %p195 = pneg %p114
        %p196 = pneg %p111
        %s197 = sand.u32 %s101, 1
        %s198 = scalar_lea.sflag [#allocation4], %s197
        %s199 = sand.u32 %s101, 1
        %s200 = smul.addr %s199, 32
        %s201 = scalar_lea.vmem [#allocation5], %s200
        %p202 = scmp.lt.s32.totalorder %s20, 1
        %s203 = scalar_select %p202, %s20, 1
        %s204 = scalar_lea.vmem %s1, %s203
        %v205 = vld [vmem:[%s175] sm:$0xff]
        %v206 = vld [vmem:[%s175 + $0x8] sm:$0xff]
        %v207 = vld [vmem:[%s175 + $0x10] sm:$0xff]
        %v208 = vld [vmem:[%s175 + $0x18] sm:$0xff]
        %v209 = vld [vmem:[%s204] sm:$0x1]
        %vm210 = vcmp.ne.s32.totalorder %v209, 0
        %v211 = vld [vmem:[%s2] sm:$0xff]
        %v212 = vld [vmem:[%s2 + $0x8] sm:$0xff]
        %v213 = vld [vmem:[%s2 + $0x10] sm:$0xff]
        %v214 = vld [vmem:[%s2 + $0x18] sm:$0xff]
        %v215 = vsel %vm210, 1, 0
        %v216 = vperm.slane %v215, 0
        %vm217 = vcmp.eq.s32.totalorder %v216, 1
        %219 = vset.pattern.permute.xlu0 0
        %220 = vperm.xlu0 %219, %v211
        %v221 = vpop.permute.xlu0 %220
        %224 = vset.pattern.permute.xlu0 0
        %225 = vperm.xlu0 %224, %v212
        %v226 = vpop.permute.xlu0 %225
        %229 = vset.pattern.permute.xlu0 0
        %230 = vperm.xlu0 %229, %v213
        %v231 = vpop.permute.xlu0 %230
        %234 = vset.pattern.permute.xlu0 0
        %235 = vperm.xlu0 %234, %v214
        %v236 = vpop.permute.xlu0 %235
        %v238 = vsel %vm217, %v221, %v205
        %v239 = vsel %vm217, %v226, %v206
        %v240 = vsel %vm217, %v231, %v207
        %v241 = vsel %vm217, %v236, %v208
        %vm242 = vcmask 523264
        %243 = vst.msk [vmem:[%s201] sm:$0xff] %vm242, %v238
        %244 = vst.msk [vmem:[%s201 + $0x8] sm:$0xff] %vm242, %v239
        %245 = vst.msk [vmem:[%s201 + $0x10] sm:$0xff] %vm242, %v240
        %246 = vst.msk [vmem:[%s201 + $0x18] sm:$0xff] %vm242, %v241
        %s247 = sand.u32 %s101, 1
        %s248 = scalar_lea.sflag [#allocation4], %s247
        %s249 = sand.u32 %s101, 1
        %s250 = smul.addr %s249, 32
        %s251 = scalar_lea.vmem [#allocation5], %s250
        // Predicated region
        $region37: #{tpu_custom_call.1} parent=31 // pred_check
          %p252 = pneg %p111
        $region38: #{tpu_custom_call.1} parent=31 // pred_check_branch
          %254 = sbr.rel (%p252) target = $region40
        $region39: #{tpu_custom_call.1} parent=31 // pred_region
          %256 = vsyncadd %s248, 0
          %s257 = smul.addr %s20, 4
          %s258 = smul.addr %s257, 8
          %s259 = scalar_lea.hbm %s3, %s258
          %s260 = sshll.u32 %s251, 4
          %s261 = int_to_ptr.vmem [resolvable:$true] %s260
          %s262 = sshll.u32 %s259, 4
          %s263 = int_to_ptr.hbm [resolvable:$true] %s262
          %268 = dma.vmem_to_hbm [thread:$0]  %s261, 512, %s263, %s248, 128, 128, 8
        $region40: #{tpu_custom_call.1} parent=31 // pred_fallthru
          _
      $region32: #{tpu_custom_call.1} parent=5 // pred_fallthru
        _
      %p269 = scmp.le.s32.totalorder 2, %s15
      // Predicated region
      $region41: #{tpu_custom_call.1} parent=5 // pred_check
        %p270 = pneg %p269
      $region42: #{tpu_custom_call.1} parent=5 // pred_check_branch
        %272 = sbr.rel (%p270) target = $region44
      $region43: #{tpu_custom_call.1} parent=5 // pred_region
        %s273 = ssub.s32 %s15, 2
        // Predicated region
        $region45: #{tpu_custom_call.1} parent=43 // pred_check
          %p274 = pneg %p117
        $region46: #{tpu_custom_call.1} parent=43 // pred_check_branch
          %276 = sbr.rel (%p274) target = $region48
        $region47: #{tpu_custom_call.1} parent=43 // pred_region
          %s277 = sand.u32 %s102, 1
          %s278 = scalar_lea.sflag [#allocation4], %s277
          %s279 = sand.u32 %s102, 1
          %s280 = smul.addr %s279, 32
          %s281 = scalar_lea.vmem [#allocation5], %s280
          %283 = dma.done %s278, 512
        $region48: #{tpu_custom_call.1} parent=43 // pred_fallthru
          _
      $region44: #{tpu_custom_call.1} parent=5 // pred_fallthru
        _
    $region6: #{tpu_custom_call.1} parent=1 // loop_footer
      %s19 = sadd.s32 1, %s15
    $region7: #{tpu_custom_call.1} parent=1 // loop_footer_branch
      %14 = sbr.rel target = $region3
    $region8: #{tpu_custom_call.1} parent=1 // loop_exit
      _
    %284 = vsyncpa [#allocation3], 1
    %s285 = scalar_lea.sflag [#allocation3], 1
    %286 = vsyncpa %s285, 1
    %287 = vsyncpa [#allocation4], 1
    %s288 = scalar_lea.sflag [#allocation4], 1
    %289 = vsyncpa %s288, 1

</llo_original>
